<compile_context>
chip_gen: v5e
topology: v5e:2x2
jax: 0.10.0
libtpu: 0.0.40
codegen_flags: <defaults>
</compile_context>

<pallas_src>
import jax
import jax.numpy as jnp
from jax.experimental import pallas as pl
from jax.experimental.pallas import tpu as pltpu


def _round_up(x, m):
    return (x + m - 1) // m * m


# Byte budget per streamed table tile (2-8 MiB is the measured sweet spot for
# a pure HBM stream); scoped-VMEM limit passed to the compiler.
_DEFAULT_TILE_BYTES = 4 * 1024 * 1024
_VMEM_LIMIT_BYTES = 32 * 1024 * 1024
# Below this many targets the kernel launch costs more than the dot itself.
_PALLAS_MIN_TARGETS = 1024


def _score_kernel(uf_ref, tgt_ref, pred_ref):
    # uf_ref:   [B, D]  resident user factors (bf16 or f32, matches the table)
    # tgt_ref:  [D, tT] transposed item-embedding tile (targets on lanes)
    # pred_ref: [B, tT] lane-dense f32 scores
    # Natural MXU orientation; bf16 inputs are ingested directly, f32 accum.
    pred_ref[...] = jnp.dot(
        uf_ref[...], tgt_ref[...], preferred_element_type=jnp.float32
    )


def precompute_item_table_t(embed_weight, dtype=jnp.bfloat16):
    """Build ONCE at init: [D, item_num] transposed copy of the embedding
    table (optionally downcast to bf16 for streaming)."""
    return jnp.asarray(embed_weight, dtype=dtype).T


def bprmf_scores_t(uF, table_t, *, tile_t=None, tile_bytes=_DEFAULT_TILE_BYTES):
    """Scores = uF @ table_t for every target column, in one pallas_call.

    uF:      [D] or [B, D] user factors (session means).
    table_t: [D, T] transposed target-item embeddings (f32 or bf16).
    Returns: [T] (if uF was 1-D) or [B, T] f32 scores.
    """
    uF = jnp.asarray(uF)
    was_1d = uF.ndim == 1
    uF = jnp.atleast_2d(uF)
    B, D = uF.shape
    Dt, T = table_t.shape
    assert Dt == D, (Dt, D)
    itemsize = jnp.dtype(table_t.dtype).itemsize
    # Match the table dtype so a bf16 table streams straight into the MXU.
    uF = uF.astype(table_t.dtype)

    if tile_t is None:
        # Byte-budgeted tiling (lane-aligned), but keep >= ~4 grid steps where
        # possible so the pipeline has depth and both v7x TCs get work.
        budget_rows = _round_up(max(tile_bytes // (D * itemsize), 128), 128)
        min_steps_rows = _round_up(pl.cdiv(T, 4), 128)
        tile_t = max(128, min(budget_rows, min_steps_rows))

    if tile_t >= T:
        tile_t = T                       # single full-array block, always legal
    else:
        tile_t = _round_up(tile_t, 128)  # lane-dense multi-tile blocks
        if tile_t >= T:
            tile_t = T
    grid_t = pl.cdiv(T, tile_t)          # ragged last block allowed (masked)

    scores = pl.pallas_call(
        _score_kernel,
        out_shape=jax.ShapeDtypeStruct((B, T), jnp.float32),
        grid_spec=pl.GridSpec(
            grid=(grid_t,),
            in_specs=[
                pl.BlockSpec((B, D), lambda i: (0, 0)),       # uF, resident
                # TODO(synk): sweep pipeline_mode=pl.Buffered(3) on v6e once
                # tiles are MiB-scale (re-check VMEM budget on v7x first).
                pl.BlockSpec((D, tile_t), lambda i: (0, i)),  # table tile
            ],
            out_specs=pl.BlockSpec((B, tile_t), lambda i: (0, i)),  # lane-dense
        ),
        compiler_params=pltpu.CompilerParams(
            dimension_semantics=("parallel",),   # v7x: split tiles across TCs
            vmem_limit_bytes=_VMEM_LIMIT_BYTES,
        ),
        cost_estimate=pl.CostEstimate(
            flops=int(2 * B * T * D),
            transcendentals=0,
            bytes_accessed=int(D * T * itemsize + B * D * uF.dtype.itemsize + B * T * 4),
        ),
    )(uF, table_t)

    # Garbage columns of a ragged last block never reach `scores` (masked
    # writeback); keep the explicit shape anyway.
    return scores[0] if was_1d else scores


def _sample_negative(key, target, item_num):
    # torch: j = randint(0, item_num - 1) redrawn while j in target.
    # torch.randint's high and jax.random.randint's maxval are both exclusive,
    # so both draw from [0, item_num - 2].
    target = jnp.asarray(target)

    def _draw(k):
        k, sub = jax.random.split(k)
        return k, jax.random.randint(sub, (), 0, item_num - 1, dtype=jnp.int32)

    def _cond(state):
        _, j = state
        return jnp.any(j == target)

    def _body(state):
        k, _ = state
        return _draw(k)

    state = _draw(key)
    _, j = jax.lax.while_loop(_cond, _body, state)
    return j


def bprmf2_forward(embed_weight, seq, target, is_train=True, key=None,
                   *, pallas_min_targets=_PALLAS_MIN_TARGETS):
    """Mirror of BPRMF2.forward(seq, target, is_train)."""
    item_num = embed_weight.shape[0]

    # uF = embed_item(seq).mean(dim=0): tiny gather + mean, done in plain JAX.
    uF = jnp.mean(jnp.take(embed_weight, seq, axis=0).astype(jnp.float32), axis=0)

    if is_train:
        # Handful of positives + 1 negative at D=32: nanoseconds of math, so
        # skip Pallas entirely (launch overhead would dominate).
        iF = jnp.take(embed_weight, target, axis=0).astype(jnp.float32)
        pred_i = iF @ uF
        j = _sample_negative(key, target, item_num)
        jF = jnp.take(embed_weight, j[None], axis=0).astype(jnp.float32)
        pred_j = jF @ uF
        return pred_i, pred_j

    T = int(target.shape[0])
    if T < pallas_min_targets:
        iF = jnp.take(embed_weight, target, axis=0).astype(jnp.float32)
        return iF @ uF
    # Large eval target set (e.g. arange(item_num) from predict()): gather
    # once, present it transposed (targets on lanes), stream through Pallas.
    tgt_t = jnp.take(embed_weight, target, axis=0).T
    return bprmf_scores_t(uF, tgt_t)


def bprmf2_predict_all(embed_weight, seqs, *, table_t=None,
                       table_dtype=jnp.bfloat16, tile_t=None):
    """Eval path of BPRMF2.predict: score every item for one or more sessions.

    seqs: [L] (one session) or [B, L] (batch of sessions) item indices.
    table_t: optional precomputed [D, item_num] transposed table (build once
             at init with precompute_item_table_t and reuse across calls).
    """
    seqs = jnp.atleast_2d(jnp.asarray(seqs))
    single = seqs.shape[0] == 1 and jnp.ndim(jnp.asarray(seqs)) == 2
    uF = jnp.mean(jnp.take(embed_weight, seqs, axis=0).astype(jnp.float32), axis=1)
    if table_t is None:
        table_t = precompute_item_table_t(embed_weight, table_dtype)
    scores = bprmf_scores_t(uF, table_t, tile_t=tile_t)  # [B, item_num]
    return scores[0] if (single and jnp.asarray(seqs).shape[0] == 1) else scores


if __name__ == "__main__":
    item_num = 2000       # large enough to exercise a multi-tile, ragged grid
    n_factors = 32        # params['item_embedding_dim']
    sigma = 0.05          # params['sigma'] default

    root = jax.random.PRNGKey(0)
    k_emb, k_seq, k_tgt, k_neg, k_seqs = jax.random.split(root, 5)

    # nn.Embedding(item_num, n_factors) with normal_(std=sigma) init.
    embed_weight = sigma * jax.random.normal(
        k_emb, (item_num, n_factors), dtype=jnp.float32
    )

    seq = jax.random.randint(k_seq, (8,), 0, item_num)      # session items
    target = jax.random.randint(k_tgt, (4,), 0, item_num)   # positive targets

    uF_ref = jnp.mean(embed_weight[seq], axis=0)

    # 1) Training-mode forward: tiny dots, pure jnp (no Pallas launch).
    pred_i, pred_j = bprmf2_forward(embed_weight, seq, target, is_train=True, key=k_neg)
    jax.block_until_ready((pred_i, pred_j))
    assert pred_i.shape == (4,) and pred_j.shape == (1,)
    ref_i = jnp.sum(uF_ref[None, :] * embed_weight[target], axis=-1)
    assert jnp.allclose(pred_i, ref_i, atol=1e-5, rtol=1e-5)
    assert bool(jnp.all(jnp.isfinite(pred_j)))

    # 2) Eval-mode forward against a small arbitrary target subset (jnp path).
    some_targets = jnp.arange(0, item_num, 7)
    pred_sub = bprmf2_forward(embed_weight, seq, some_targets, is_train=False)
    jax.block_until_ready(pred_sub)
    ref_sub = jnp.sum(uF_ref[None, :] * embed_weight[some_targets], axis=-1)
    assert jnp.allclose(pred_sub, ref_sub, atol=1e-5, rtol=1e-5)

    # 3) Eval-mode forward with target = arange(item_num) (what predict() does):
    #    large target set -> gathered, transposed, scored by the Pallas kernel.
    pred_eval_all = bprmf2_forward(embed_weight, seq, jnp.arange(item_num), is_train=False)
    jax.block_until_ready(pred_eval_all)
    ref_all = jnp.sum(embed_weight * uF_ref[None, :], axis=-1)
    assert pred_eval_all.shape == (item_num,)
    assert jnp.allclose(pred_eval_all, ref_all, atol=1e-3, rtol=1e-2)

    # 4) Predict-all with a precomputed f32 transposed table (byte-budgeted
    #    auto tiling -> multi-tile lane-dense grid).
    table_t_f32 = precompute_item_table_t(embed_weight, jnp.float32)
    pred_all = bprmf2_predict_all(embed_weight, seq, table_t=table_t_f32)
    jax.block_until_ready(pred_all)
    assert pred_all.shape == (item_num,)
    assert jnp.allclose(pred_all, ref_all, atol=1e-3, rtol=1e-2)

    # 5) Batched sessions + bf16-streamed table, explicit tile_t=512 so the
    #    grid has a ragged last block (2000 = 3*512 + 464) with no jnp.pad.
    seqs = jax.random.randint(k_seqs, (3, 8), 0, item_num)
    table_t_bf16 = precompute_item_table_t(embed_weight, jnp.bfloat16)
    pred_batch = bprmf2_predict_all(embed_weight, seqs, table_t=table_t_bf16, tile_t=512)
    jax.block_until_ready(pred_batch)
    assert pred_batch.shape == (3, item_num)
    uF_b = jnp.mean(embed_weight[seqs], axis=1)
    ref_batch = jnp.dot(uF_b.astype(jnp.bfloat16), table_t_bf16,
                        preferred_element_type=jnp.float32)
    assert jnp.allclose(pred_batch, ref_batch, atol=1e-3, rtol=1e-2)

    # TODO(synk): fit()/predict() driver loops (SGD, top-k ranking) are host-side
    # training/eval plumbing, not part of the forward pass translated here.
    print("KERNEL_OK")
</pallas_src>

<mosaic_0001>
module attributes {stable_mosaic.version = 11 : i64} {
  func.func @_score_kernel(%arg0: i32, %arg1: memref<1x32xf32, #tpu.memory_space<vmem>>, %arg2: memref<32x512xf32, #tpu.memory_space<vmem>>, %arg3: memref<1x512xf32, #tpu.memory_space<vmem>>) attributes {dimension_semantics = [#tpu.dimension_semantics<parallel>], iteration_bounds = array<i64: 4>, scalar_prefetch = 0 : i64, scratch_operands = 0 : i64, tpu.core_type = #tpu.core_type<tc>, window_params = [{pipeline_mode = #tpu.pipeline_mode<synchronous>, transform_indices = @transform_0, window_bounds = array<i64: 1, 32>}, {transform_indices = @transform_1, window_bounds = array<i64: 32, 512>}, {transform_indices = @transform_2, window_bounds = array<i64: 1, 512>}]} {
    %c0 = arith.constant 0 : index
    %c0_0 = arith.constant 0 : index
    %0 = vector.load %arg1[%c0, %c0_0] : memref<1x32xf32, #tpu.memory_space<vmem>>, vector<1x32xf32>
    %c0_1 = arith.constant 0 : index
    %c0_2 = arith.constant 0 : index
    %1 = vector.load %arg2[%c0_1, %c0_2] : memref<32x512xf32, #tpu.memory_space<vmem>>, vector<32x512xf32>
    %cst = arith.constant dense<0.000000e+00> : vector<1x512xf32>
    %2 = tpu.matmul %0, %1, %cst {dimension_numbers = #tpu.dot_dimension_numbers<[1], [0], [0], [1], [0, 0, 1, 1], [], []>} : vector<1x32xf32>, vector<32x512xf32>, vector<1x512xf32> -> vector<1x512xf32>
    %c0_3 = arith.constant 0 : index
    %c0_4 = arith.constant 0 : index
    %3 = vector.load %arg3[%c0_3, %c0_4] : memref<1x512xf32, #tpu.memory_space<vmem>>, vector<1x512xf32>
    tpu.vector_store %arg3[%c0_3, %c0_4], %2 {strides = array<i32>} : memref<1x512xf32, #tpu.memory_space<vmem>>, vector<1x512xf32>,
    return
  }
  func.func @transform_0(%arg0: i32) -> (i32, i32) {
    %c0_i32 = arith.constant 0 : i32
    %c0_i32_0 = arith.constant 0 : i32
    %c0_i32_1 = arith.constant 0 : i32
    return %c0_i32, %c0_i32_0 : i32, i32
  }
  func.func @transform_1(%arg0: i32) -> (i32, i32) {
    %c0_i32 = arith.constant 0 : i32
    %c0_i32_0 = arith.constant 0 : i32
    return %c0_i32, %arg0 : i32, i32
  }
  func.func @transform_2(%arg0: i32) -> (i32, i32) {
    %c0_i32 = arith.constant 0 : i32
    %c0_i32_0 = arith.constant 0 : i32
    return %c0_i32, %arg0 : i32, i32
  }
}

</mosaic_0001>

<llo_original>
// kernel: tpu_custom_call.1
$region0: #{tpu_custom_call.1}
  #allocation0 [shape = 'u32[]', space=smem, size = 0x4, offset = 0x4, fixed_abs, tag = 'smem constant byte address 0x4 - core index']
  #allocation1 [shape = 'u32[72,128]{1,0:T(1,128)}', space=vmem, size = 0x9000, scoped, tag = 'internal scratch']
  %s0 = inlined_call_operand.hbm [shape: f32[1,32], index: 0, kind: input, shape index: {}]
  %s1 = inlined_call_operand.hbm [shape: f32[32,2000], index: 1, kind: input, shape index: {}]
  %s2 = inlined_call_operand.hbm [shape: f32[1,2000], index: 2, kind: output, shape index: {}]
  %s3 = sld [smem:[#allocation0]]
  $region49: #{tpu_custom_call.1} parent=0
    _
  %s5 = ssub.s32 1, %s3
  %s6 = scalar_select 0, %s5, %s3
  $region1: #{tpu_custom_call.1} parent=0
    #allocation2 [shape = 'u8[512]{0}', space=vmem, size = 0x400, scoped, tag = 'input window, operand 0, single buffered']
    #allocation3 [shape = 's32[2]{0}', space=sflag, size = 0x8, scoped, tag = 'scoped memory for tpu_custom_call.1']
    #allocation4 [shape = 's32[2]{0}', space=sflag, size = 0x8, scoped, tag = 'scoped memory for tpu_custom_call.1']
    #allocation5 [shape = 'u8[131072]{0}', space=vmem, size = 0x20000, scoped, tag = 'input window, operand 1']
    #allocation6 [shape = 's32[2]{0}', space=sflag, size = 0x8, scoped, tag = 'scoped memory for tpu_custom_call.1']
    #allocation7 [shape = 'u8[4096]{0}', space=vmem, size = 0x1000, scoped, tag = 'output window, operand 0']
    %7 = vsyncpa [#allocation3], 0
    %8 = vsyncpa [#allocation6], 0
    %s9 = scalar_lea.sflag [#allocation6], 1
    %10 = vsyncpa %s9, 0
    %11 = vsyncpa [#allocation4], 0
    %s12 = scalar_lea.sflag [#allocation4], 1
    %13 = vsyncpa %s12, 0
    loop: start=0, step=1, limit=6
    $region2: #{tpu_custom_call.1} parent=1 // loop_pre_header
      _
    $region3: #{tpu_custom_call.1} parent=1 // loop_header
      %s15 = sphi 0, %s19
      %p16 = scmp.ge.s32.totalorder %s15, 6
      %s23 = sphi 0, %s23
      %s25 = sphi 0, %s23
      %s26 = sphi 0, %s25
      %s40 = sphi 0, %s26
      %s46 = sphi 0, %s48
      %s49 = sphi 0, %s46
      %s50 = sphi 0, %s49
      %s66 = sphi 0, %s50
      %s72 = sphi 0, %s74
      %s75 = sphi 0, %s72
      %s76 = sphi 0, %s75
      %s92 = sphi 0, %s76
    $region4: #{tpu_custom_call.1} parent=1 // loop_header_branch
      %18 = sbr.rel (%p16) target = $region8
    $region5: #{tpu_custom_call.1} parent=1 // loop_body
      %s20 = ssub.s32 %s15, 1
      %s21 = ssub.s32 %s15, 2
      %s22 = sadd.s32 %s15, 1
      %s24 = sadd.s32 %s23, 1
      %p27 = scmp.eq.s32.totalorder %s15, 3
      %p28 = scmp.ne.s32.totalorder %s23, %s25
      %p29 = scmp.eq.s32.totalorder %s15, 0
      %p30 = por %p28, %p29
      %p31 = scmp.ne.s32.totalorder %s23, %s25
      %p32 = scmp.eq.s32.totalorder %s20, 3
      %p33 = por %p31, %p32
      %p34 = scmp.ne.s32.totalorder %s25, %s26
      %p35 = scmp.eq.s32.totalorder %s20, 0
      %p36 = por %p34, %p35
      %p37 = scmp.ne.s32.totalorder %s25, %s26
      %p38 = scmp.eq.s32.totalorder %s21, 3
      %p39 = por %p37, %p38
      %p41 = scmp.ne.s32.totalorder %s26, %s40
      %p42 = scmp.eq.s32.totalorder %s21, 0
      %p43 = por %p41, %p42
      %s44 = ssub.s32 %s15, %s22
      %p45 = scmp.eq.s32.totalorder %s44, 0
      %s47 = sadd.s32 %s46, 1
      %s48 = scalar_select %p45, %s46, %s47
      %p51 = pneg %p45
      %p52 = scmp.eq.s32.totalorder %s15, 3
      %p53 = por %p51, %p52
      %p54 = scmp.ne.s32.totalorder %s46, %s49
      %p55 = scmp.eq.s32.totalorder %s15, 0
      %p56 = por %p54, %p55
      %p57 = scmp.ne.s32.totalorder %s46, %s49
      %p58 = scmp.eq.s32.totalorder %s20, 3
      %p59 = por %p57, %p58
      %p60 = scmp.ne.s32.totalorder %s49, %s50
      %p61 = scmp.eq.s32.totalorder %s20, 0
      %p62 = por %p60, %p61
      %p63 = scmp.ne.s32.totalorder %s49, %s50
      %p64 = scmp.eq.s32.totalorder %s21, 3
      %p65 = por %p63, %p64
      %p67 = scmp.ne.s32.totalorder %s50, %s66
      %p68 = scmp.eq.s32.totalorder %s21, 0
      %p69 = por %p67, %p68
      %s70 = ssub.s32 %s15, %s22
      %p71 = scmp.eq.s32.totalorder %s70, 0
      %s73 = sadd.s32 %s72, 1
      %s74 = scalar_select %p71, %s72, %s73
      %p77 = pneg %p71
      %p78 = scmp.eq.s32.totalorder %s15, 3
      %p79 = por %p77, %p78
      %p80 = scmp.ne.s32.totalorder %s72, %s75
      %p81 = scmp.eq.s32.totalorder %s15, 0
      %p82 = por %p80, %p81
      %p83 = scmp.ne.s32.totalorder %s72, %s75
      %p84 = scmp.eq.s32.totalorder %s20, 3
      %p85 = por %p83, %p84
      %p86 = scmp.ne.s32.totalorder %s75, %s76
      %p87 = scmp.eq.s32.totalorder %s20, 0
      %p88 = por %p86, %p87
      %p89 = scmp.ne.s32.totalorder %s75, %s76
      %p90 = scmp.eq.s32.totalorder %s21, 3
      %p91 = por %p89, %p90
      %p93 = scmp.ne.s32.totalorder %s76, %s92
      %p94 = scmp.eq.s32.totalorder %s21, 0
      %p95 = por %p93, %p94
      %p96 = scmp.le.s32.totalorder 1, %s15
      %p97 = scmp.lt.s32.totalorder %s15, 5
      %p98 = pnand %p96, %p97
      %p99 = pneg %p98
      // Predicated region
      $region9: #{tpu_custom_call.1} parent=5 // pred_check
        _
      $region10: #{tpu_custom_call.1} parent=5 // pred_check_branch
        %101 = sbr.rel (%p98) target = $region12
      $region11: #{tpu_custom_call.1} parent=5 // pred_region
        %s102 = ssub.s32 %s15, 1
        // Predicated region
        $region13: #{tpu_custom_call.1} parent=11 // pred_check
          %p103 = pneg %p36
        $region14: #{tpu_custom_call.1} parent=11 // pred_check_branch
          %105 = sbr.rel (%p103) target = $region16
        $region15: #{tpu_custom_call.1} parent=11 // pred_region
          %107 = vsyncadd [#allocation3], 0
          %s109 = sshll.u32 %s0, 4
          %s110 = int_to_ptr.hbm [resolvable:$true] %s109
          %s111 = sshll.u32 [#allocation2], 4
          %s112 = int_to_ptr.vmem [resolvable:$true] %s111
          %114 = dma.hbm_to_vmem [thread:$0]  %s110, 16, %s112, [#allocation3]
        $region16: #{tpu_custom_call.1} parent=11 // pred_fallthru
          _
      $region12: #{tpu_custom_call.1} parent=5 // pred_fallthru
        _
      %p115 = scmp.lt.s32.totalorder %s15, 4
      // Predicated region
      $region17: #{tpu_custom_call.1} parent=5 // pred_check
        %p116 = pneg %p115
      $region18: #{tpu_custom_call.1} parent=5 // pred_check_branch
        %118 = sbr.rel (%p116) target = $region20
      $region19: #{tpu_custom_call.1} parent=5 // pred_region
        // Predicated region
        $region21: #{tpu_custom_call.1} parent=19 // pred_check
          %p119 = pneg %p56
        $region22: #{tpu_custom_call.1} parent=19 // pred_check_branch
          %121 = sbr.rel (%p119) target = $region24
        $region23: #{tpu_custom_call.1} parent=19 // pred_region
          %s122 = sand.u32 %s46, 1
          %s123 = scalar_lea.sflag [#allocation6], %s122
          %s124 = sand.u32 %s46, 1
          %s125 = smul.addr %s124, 128
          %s126 = scalar_lea.vmem [#allocation5], %s125
          %s127 = smul.u32 4, %s15
          %129 = vsyncadd %s123, 0
          %s130 = smul.addr %s127, 8
          %s131 = scalar_lea.hbm %s1, %s130
          %s132 = sshll.u32 %s131, 4
          %s133 = int_to_ptr.hbm [resolvable:$true] %s132
          %s134 = sshll.u32 %s126, 4
          %s135 = int_to_ptr.vmem [resolvable:$true] %s134
          %140 = dma.hbm_to_vmem [thread:$0]  %s133, 2048, %s135, %s123, 2048, 512, 32
        $region24: #{tpu_custom_call.1} parent=19 // pred_fallthru
          _
      $region20: #{tpu_custom_call.1} parent=5 // pred_fallthru
        _
      %p141 = scmp.le.s32.totalorder 1, %s15
      %p142 = scmp.lt.s32.totalorder %s15, 5
      %p143 = pnand %p141, %p142
      %p144 = pneg %p143
      // Predicated region
      $region25: #{tpu_custom_call.1} parent=5 // pred_check
        _
      $region26: #{tpu_custom_call.1} parent=5 // pred_check_branch
        %146 = sbr.rel (%p143) target = $region28
      $region27: #{tpu_custom_call.1} parent=5 // pred_region
        %s147 = ssub.s32 %s15, 1
        // Predicated region
        $region29: #{tpu_custom_call.1} parent=27 // pred_check
          %p148 = pneg %p36
        $region30: #{tpu_custom_call.1} parent=27 // pred_check_branch
          %150 = sbr.rel (%p148) target = $region32
        $region31: #{tpu_custom_call.1} parent=27 // pred_region
          %152 = dma.done [#allocation3], 16
        $region32: #{tpu_custom_call.1} parent=27 // pred_fallthru
          _
        %s153 = sand.u32 %s49, 1
        %s154 = scalar_lea.sflag [#allocation6], %s153
        %s155 = sand.u32 %s49, 1
        %s156 = smul.addr %s155, 128
        %s157 = scalar_lea.vmem [#allocation5], %s156
        // Predicated region
        $region33: #{tpu_custom_call.1} parent=27 // pred_check
          %p158 = pneg %p62
        $region34: #{tpu_custom_call.1} parent=27 // pred_check_branch
          %160 = sbr.rel (%p158) target = $region36
        $region35: #{tpu_custom_call.1} parent=27 // pred_region
          %162 = dma.done %s154, 2048
        $region36: #{tpu_custom_call.1} parent=27 // pred_fallthru
          _
        %p163 = pneg %p36
        %p164 = pneg %p33
        %s165 = sand.u32 %s49, 1
        %s166 = scalar_lea.sflag [#allocation6], %s165
        %s167 = sand.u32 %s49, 1
        %s168 = smul.addr %s167, 128
        %s169 = scalar_lea.vmem [#allocation5], %s168
        %p170 = pneg %p62
        %p171 = pneg %p59
        %p172 = pneg %p88
        %p173 = pneg %p85
        %s174 = sand.u32 %s75, 1
        %s175 = scalar_lea.sflag [#allocation4], %s174
        %s176 = sand.u32 %s75, 1
        %s177 = smul.addr %s176, 4
        %s178 = scalar_lea.vmem [#allocation7], %s177
        %s179 = smul.u32 4, %s20
        %s180 = smul.u32 4, %s20
        %v181 = vld [vmem:[#allocation2] sm:$0x1]
        %v182 = vld [vmem:[%s157] sm:$0xff]
        %v183 = vld [vmem:[%s157 + $0x8] sm:$0xff]
        %v184 = vld [vmem:[%s157 + $0x10] sm:$0xff]
        %v185 = vld [vmem:[%s157 + $0x18] sm:$0xff]
        %v186 = vld [vmem:[%s157 + $0x20] sm:$0xff]
        %v187 = vld [vmem:[%s157 + $0x28] sm:$0xff]
        %v188 = vld [vmem:[%s157 + $0x30] sm:$0xff]
        %v189 = vld [vmem:[%s157 + $0x38] sm:$0xff]
        %v190 = vld [vmem:[%s157 + $0x40] sm:$0xff]
        %v191 = vld [vmem:[%s157 + $0x48] sm:$0xff]
        %v192 = vld [vmem:[%s157 + $0x50] sm:$0xff]
        %v193 = vld [vmem:[%s157 + $0x58] sm:$0xff]
        %v194 = vld [vmem:[%s157 + $0x60] sm:$0xff]
        %v195 = vld [vmem:[%s157 + $0x68] sm:$0xff]
        %v196 = vld [vmem:[%s157 + $0x70] sm:$0xff]
        %v197 = vld [vmem:[%s157 + $0x78] sm:$0xff]
        %vm198 = vcmask 261120
        %v200 = vsel %vm198, %v181, 0
        %202 = vmatpush.msra.mxu0 0.0
        %203 = vmatpush.msra.mxu0 0.0
        %204 = vmatpush.msra.mxu0 0.0
        %205 = vmatpush.msra.mxu0 0.0
        %206 = vmatpush.msra.mxu0 0.0
        %207 = vmatpush.msra.mxu0 0.0
        %208 = vmatpush.msra.mxu0 0.0
        %209 = vmatpush.msra.mxu0 0.0
        %210 = vmatpush.msra.mxu0 0.0
        %211 = vmatpush.msra.mxu0 0.0
        %212 = vmatpush.msra.mxu0 0.0
        %213 = vmatpush.msra.mxu0 0.0
        %214 = vmatpush.msra.mxu0 %v194
        %215 = vmatpush.msra.mxu0 %v190
        %216 = vmatpush.msra.mxu0 %v186
        %217 = vmatpush.msra.mxu0 %v182
        %218 = vmatmul.f32.gmra.mxu0 %v200
        %v219 = vpop.f32.mrf.mxu0
        %v220 = vadd.f32 0.0, %v219
        %221 = vdwg.mxu0
        %222 = vmatpush.msra.mxu0 0.0
        %223 = vmatpush.msra.mxu0 0.0
        %224 = vmatpush.msra.mxu0 0.0
        %225 = vmatpush.msra.mxu0 0.0
        %226 = vmatpush.msra.mxu0 0.0
        %227 = vmatpush.msra.mxu0 0.0
        %228 = vmatpush.msra.mxu0 0.0
        %229 = vmatpush.msra.mxu0 0.0
        %230 = vmatpush.msra.mxu0 0.0
        %231 = vmatpush.msra.mxu0 0.0
        %232 = vmatpush.msra.mxu0 0.0
        %233 = vmatpush.msra.mxu0 0.0
        %234 = vmatpush.msra.mxu0 %v195
        %235 = vmatpush.msra.mxu0 %v191
        %236 = vmatpush.msra.mxu0 %v187
        %237 = vmatpush.msra.mxu0 %v183
        %238 = vmatmul.f32.gmra.mxu0 %v200
        %v239 = vpop.f32.mrf.mxu0
        %v240 = vadd.f32 0.0, %v239
        %241 = vdwg.mxu0
        %242 = vmatpush.msra.mxu0 0.0
        %243 = vmatpush.msra.mxu0 0.0
        %244 = vmatpush.msra.mxu0 0.0
        %245 = vmatpush.msra.mxu0 0.0
        %246 = vmatpush.msra.mxu0 0.0
        %247 = vmatpush.msra.mxu0 0.0
        %248 = vmatpush.msra.mxu0 0.0
        %249 = vmatpush.msra.mxu0 0.0
        %250 = vmatpush.msra.mxu0 0.0
        %251 = vmatpush.msra.mxu0 0.0
        %252 = vmatpush.msra.mxu0 0.0
        %253 = vmatpush.msra.mxu0 0.0
        %254 = vmatpush.msra.mxu0 %v196
        %255 = vmatpush.msra.mxu0 %v192
        %256 = vmatpush.msra.mxu0 %v188
        %257 = vmatpush.msra.mxu0 %v184
        %258 = vmatmul.f32.gmra.mxu0 %v200
        %v259 = vpop.f32.mrf.mxu0
        %v260 = vadd.f32 0.0, %v259
        %261 = vdwg.mxu0
        %262 = vmatpush.msra.mxu0 0.0
        %263 = vmatpush.msra.mxu0 0.0
        %264 = vmatpush.msra.mxu0 0.0
        %265 = vmatpush.msra.mxu0 0.0
        %266 = vmatpush.msra.mxu0 0.0
        %267 = vmatpush.msra.mxu0 0.0
        %268 = vmatpush.msra.mxu0 0.0
        %269 = vmatpush.msra.mxu0 0.0
        %270 = vmatpush.msra.mxu0 0.0
        %271 = vmatpush.msra.mxu0 0.0
        %272 = vmatpush.msra.mxu0 0.0
        %273 = vmatpush.msra.mxu0 0.0
        %274 = vmatpush.msra.mxu0 %v197
        %275 = vmatpush.msra.mxu0 %v193
        %276 = vmatpush.msra.mxu0 %v189
        %277 = vmatpush.msra.mxu0 %v185
        %278 = vmatmul.f32.gmra.mxu0 %v200
        %v279 = vpop.f32.mrf.mxu0
        %v280 = vadd.f32 0.0, %v279
        %281 = vdwg.mxu0
        %v286 = vrot.slane %v240, 7
        %v287 = vrot.slane %v260, 6
        %v288 = vrot.slane %v280, 5
        %vm289 = vcmask 1040384
        %v290 = vsel %vm289, %v220, %v286
        %vm291 = vcmask 1042434
        %v292 = vsel %vm291, %v287, %v288
        %vm293 = vcmask 1041408
        %v294 = vsel %vm293, %v290, %v292
        %v296 = vlaneseq
        %vm297 = vcmp.ge.s32.totalorder %v296, 0
        %vm298 = vcmp.lt.s32.totalorder %v296, 512
        %vm299 = vmand %vm297, %vm298
        %300 = vst.msk [vmem:[%s178] sm:$0xf] %vm299, %v294
        %s301 = sand.u32 %s75, 1
        %s302 = scalar_lea.sflag [#allocation4], %s301
        %s303 = sand.u32 %s75, 1
        %s304 = smul.addr %s303, 4
        %s305 = scalar_lea.vmem [#allocation7], %s304
        // Predicated region
        $region37: #{tpu_custom_call.1} parent=27 // pred_check
          %p306 = pneg %p85
        $region38: #{tpu_custom_call.1} parent=27 // pred_check_branch
          %308 = sbr.rel (%p306) target = $region40
        $region39: #{tpu_custom_call.1} parent=27 // pred_region
          %s309 = smul.u32 4, %s20
          %311 = vsyncadd %s302, 0
          %s312 = scalar_lea.hbm %s2, %s309
          %s314 = sshll.u32 %s305, 4
          %s315 = int_to_ptr.vmem [resolvable:$true] %s314
          %s316 = sshll.u32 %s312, 4
          %s317 = int_to_ptr.hbm [resolvable:$true] %s316
          %319 = dma.vmem_to_hbm [thread:$0]  %s315, 64, %s317, %s302
        $region40: #{tpu_custom_call.1} parent=27 // pred_fallthru
          _
      $region28: #{tpu_custom_call.1} parent=5 // pred_fallthru
        _
      %p320 = scmp.le.s32.totalorder 2, %s15
      // Predicated region
      $region41: #{tpu_custom_call.1} parent=5 // pred_check
        %p321 = pneg %p320
      $region42: #{tpu_custom_call.1} parent=5 // pred_check_branch
        %323 = sbr.rel (%p321) target = $region44
      $region43: #{tpu_custom_call.1} parent=5 // pred_region
        %s324 = ssub.s32 %s15, 2
        // Predicated region
        $region45: #{tpu_custom_call.1} parent=43 // pred_check
          %p325 = pneg %p91
        $region46: #{tpu_custom_call.1} parent=43 // pred_check_branch
          %327 = sbr.rel (%p325) target = $region48
        $region47: #{tpu_custom_call.1} parent=43 // pred_region
          %s328 = sand.u32 %s76, 1
          %s329 = scalar_lea.sflag [#allocation4], %s328
          %s330 = sand.u32 %s76, 1
          %s331 = smul.addr %s330, 4
          %s332 = scalar_lea.vmem [#allocation7], %s331
          %334 = dma.done %s329, 64
        $region48: #{tpu_custom_call.1} parent=43 // pred_fallthru
          _
      $region44: #{tpu_custom_call.1} parent=5 // pred_fallthru
        _
    $region6: #{tpu_custom_call.1} parent=1 // loop_footer
      %s19 = sadd.s32 1, %s15
    $region7: #{tpu_custom_call.1} parent=1 // loop_footer_branch
      %14 = sbr.rel target = $region3
    $region8: #{tpu_custom_call.1} parent=1 // loop_exit
      _
    %335 = vsyncpa [#allocation3], 1
    %s336 = scalar_lea.sflag [#allocation3], 1
    %337 = vsyncpa %s336, 1
    %338 = vsyncpa [#allocation6], 1
    %s339 = scalar_lea.sflag [#allocation6], 1
    %340 = vsyncpa %s339, 1
    %341 = vsyncpa [#allocation4], 1
    %s342 = scalar_lea.sflag [#allocation4], 1
    %343 = vsyncpa %s342, 1

</llo_original>
